<compile_context>
chip_gen: v6e
topology: v6e:2x2x1
jax: 0.10.0
libtpu: 0.0.40
codegen_flags: <defaults>
</compile_context>

<pallas_src>
import functools

import jax
import jax.numpy as jnp
from jax.experimental import pallas as pl
from jax.experimental.pallas import tpu as pltpu

_LANE = 128
# Largest lane tile per grid step.  At 131072 f32 lanes a step streams ~3 MB
# HBM<->VMEM (>> the ~0.35 us fixed per-step overhead), while the
# double-buffered in+out blocks total ~6.3 MB VMEM -- safe on all generations.
_MAX_TILE_HW = 128 * 1024
# For small images, batch several per grid step until one step covers at least
# this many lanes (amortizes the serial per-step overhead).
_TARGET_STEP_LANES = 64 * 1024


def _round_up(x, m):
    return ((x + m - 1) // m) * m


def _norm_conv1x1_relu_kernel(x_ref, w_ref, b_ref, o_ref):
    """Fused (normalize-folded 1x1 conv + bias + ReLU) over a (BN, C, T) tile.

    x_ref: (BN, C_in, T)  VMEM     o_ref: (BN, C_out, T) VMEM
    w_ref: (C_out, C_in)  SMEM     b_ref: (C_out,)       SMEM

    The contraction is only 3x3, so it is unrolled on the VPU with scalar
    weights from SMEM instead of paying MXU push/pop latency for a <0.1%-
    utilized matmul.  The kernel is HBM-bandwidth bound either way.
    """
    x = x_ref[...]                                   # (BN, C_in, T)
    c_out, c_in = w_ref.shape                        # static (3, 3)
    outs = []
    for o in range(c_out):                           # static unroll
        acc = x[:, 0, :] * w_ref[o, 0]
        for c in range(1, c_in):
            acc = acc + x[:, c, :] * w_ref[o, c]
        outs.append(jnp.maximum(acc + b_ref[o], 0.0)[:, None, :])
    # One lane-dense, unmasked full-block store.
    o_ref[...] = jnp.concatenate(outs, axis=1)


@functools.partial(jax.jit, static_argnames=("tile_hw", "batch_block"))
def _conv1x1_relu_impl(x_flat, w, b, *, tile_hw, batch_block):
    """x_flat: (N_pad, C_in, HW_pad) f32; w: (C_out, C_in); b: (C_out,)."""
    n_pad, c_in, hw_pad = x_flat.shape
    c_out = w.shape[0]
    grid = (n_pad // batch_block, hw_pad // tile_hw)
    return pl.pallas_call(
        _norm_conv1x1_relu_kernel,
        out_shape=jax.ShapeDtypeStruct((n_pad, c_out, hw_pad), jnp.float32),
        grid_spec=pltpu.PrefetchScalarGridSpec(
            num_scalar_prefetch=0,
            grid=grid,
            in_specs=[
                pl.BlockSpec((batch_block, c_in, tile_hw),
                             lambda i, t: (i, 0, t)),
                # Tiny weight/bias tables live in SMEM; read as scalars.
                pl.BlockSpec(memory_space=pltpu.MemorySpace.SMEM),
                pl.BlockSpec(memory_space=pltpu.MemorySpace.SMEM),
            ],
            out_specs=pl.BlockSpec((batch_block, c_out, tile_hw),
                                   lambda i, t: (i, 0, t)),
        ),
        compiler_params=pltpu.CompilerParams(
            # Both axes independent -> v7x megacore can shard either one.
            dimension_semantics=("parallel", "parallel"),
            # Explicit scoped-VMEM budget: safe on v5e (128 MiB phys) and
            # v7x (64 MiB phys), above v5e's 16 MiB default.
            vmem_limit_bytes=32 * 1024 * 1024,
        ),
    )(x_flat, w, b)


def conv1x1_relu(x_nchw, w, b):
    """x_nchw: (N, C_in, H, W) f32; w: (C_out, C_in); b: (C_out,)."""
    n, c_in, h, wd = x_nchw.shape
    c_out = w.shape[0]
    hw = h * wd

    # Lane tile: as large as possible while minimizing padding.  Split the
    # (128-rounded) spatial extent into the fewest <=_MAX_TILE_HW tiles.
    hw_r = _round_up(hw, _LANE)
    n_tiles = -(-hw_r // _MAX_TILE_HW)
    tile_hw = _round_up(-(-hw_r // n_tiles), _LANE)
    hw_pad = tile_hw * n_tiles

    # For tiny images, batch several per grid step so each step still moves
    # a substantial DMA volume.
    batch_block = max(1, min(n, _TARGET_STEP_LANES // tile_hw))
    n_pad = _round_up(n, batch_block)

    x_flat = x_nchw.reshape(n, c_in, hw)            # NCHW -> (N, C, HW) glue
    x_flat = jnp.pad(x_flat, ((0, n_pad - n), (0, 0), (0, hw_pad - hw)))

    out = _conv1x1_relu_impl(
        x_flat,
        w.astype(jnp.float32),
        b.astype(jnp.float32),
        tile_hw=tile_hw,
        batch_block=batch_block,
    )
    return out[:n, :, :hw].reshape(n, c_out, h, wd)


def model_forward(images, w, b, mean, std):
    """Mirrors Model.forward(images: List[Tensor]) -> List[Dict].

    Normalization (from ParamsDetection transforms) is folded into the 1x1
    conv in plain JAX glue; the fused scale + channel-mix + bias + ReLU runs
    in the Pallas kernel.
    """
    # fold (x - mean) / std into the conv:  W' = W / std,  b' = b - W @ (mean/std)
    w_fused = w / std[None, :]
    b_fused = b - w @ (mean / std)

    x = jnp.stack(images, axis=0)                   # (N, C, H, W) NCHW
    feats = conv1x1_relu(x, w_fused, b_fused)
    return [{"features": feats[i]} for i in range(feats.shape[0])]


if __name__ == "__main__":
    key = jax.random.PRNGKey(0)
    k_img, k_w, k_b = jax.random.split(key, 3)

    # Small shapes consistent with ParamsDetection (3-channel images,
    # output_channels=3); spatial kept small for the synthetic run.
    N, C_IN, H, W = 2, 3, 16, 16
    C_OUT = 3

    imgs = jax.random.uniform(k_img, (N, C_IN, H, W), dtype=jnp.float32)
    images = [imgs[i] for i in range(N)]            # List[Tensor]-like API

    w = jax.random.normal(k_w, (C_OUT, C_IN), dtype=jnp.float32) * 0.1
    b = jax.random.normal(k_b, (C_OUT,), dtype=jnp.float32) * 0.1
    mean = jnp.array([0.485, 0.456, 0.406], dtype=jnp.float32)
    std = jnp.array([0.229, 0.224, 0.225], dtype=jnp.float32)

    out = model_forward(images, w, b, mean, std)
    jax.block_until_ready([d["features"] for d in out])

    # correctness check against plain-JAX reference
    x = jnp.stack(images, axis=0)
    x_norm = (x - mean[None, :, None, None]) / std[None, :, None, None]
    ref = jnp.maximum(
        jnp.einsum("oc,nchw->nohw", w, x_norm) + b[None, :, None, None], 0.0
    )
    got = jnp.stack([d["features"] for d in out], axis=0)
    assert jnp.allclose(got, ref, atol=1e-5, rtol=1e-5), "mismatch vs reference"

    print("KERNEL_OK")
</pallas_src>

<mosaic_0001>
module attributes {stable_mosaic.version = 11 : i64} {
  func.func @_norm_conv1x1_relu_kernel(%arg0: i32, %arg1: i32, %arg2: memref<2x3x256xf32, #tpu.memory_space<vmem>>, %arg3: memref<3x3xf32, #tpu.memory_space<smem>>, %arg4: memref<3xf32, #tpu.memory_space<smem>>, %arg5: memref<2x3x256xf32, #tpu.memory_space<vmem>>) attributes {dimension_semantics = [#tpu.dimension_semantics<parallel>, #tpu.dimension_semantics<parallel>], iteration_bounds = array<i64: 1, 1>, scalar_prefetch = 0 : i64, scratch_operands = 0 : i64, tpu.core_type = #tpu.core_type<tc>, window_params = [{transform_indices = @transform_0, window_bounds = array<i64: 2, 3, 256>}, {transform_indices = @transform_1, window_bounds = array<i64: 3, 3>}, {transform_indices = @transform_2, window_bounds = array<i64: 3>}, {transform_indices = @transform_3, window_bounds = array<i64: 2, 3, 256>}]} {
    %c0 = arith.constant 0 : index
    %c0_0 = arith.constant 0 : index
    %c0_1 = arith.constant 0 : index
    %0 = vector.load %arg2[%c0, %c0_0, %c0_1] : memref<2x3x256xf32, #tpu.memory_space<vmem>>, vector<2x3x256xf32>
    %1 = vector.extract_strided_slice %0 {offsets = [0, 0, 0], sizes = [2, 1, 256], strides = [1, 1, 1]} : vector<2x3x256xf32> to vector<2x1x256xf32>
    %2 = vector.shape_cast %1 : vector<2x1x256xf32> to vector<2x256xf32>
    %c0_2 = arith.constant 0 : index
    %c0_3 = arith.constant 0 : index
    %3 = memref.load %arg3[%c0_2, %c0_3] : memref<3x3xf32, #tpu.memory_space<smem>>
    %4 = vector.broadcast %3 : f32 to vector<2x256xf32>
    %5 = arith.mulf %2, %4 : vector<2x256xf32>
    %6 = vector.extract_strided_slice %0 {offsets = [0, 1, 0], sizes = [2, 1, 256], strides = [1, 1, 1]} : vector<2x3x256xf32> to vector<2x1x256xf32>
    %7 = vector.shape_cast %6 : vector<2x1x256xf32> to vector<2x256xf32>
    %c0_4 = arith.constant 0 : index
    %c1 = arith.constant 1 : index
    %8 = memref.load %arg3[%c0_4, %c1] : memref<3x3xf32, #tpu.memory_space<smem>>
    %9 = vector.broadcast %8 : f32 to vector<2x256xf32>
    %10 = arith.mulf %7, %9 : vector<2x256xf32>
    %11 = arith.addf %5, %10 : vector<2x256xf32>
    %12 = vector.extract_strided_slice %0 {offsets = [0, 2, 0], sizes = [2, 1, 256], strides = [1, 1, 1]} : vector<2x3x256xf32> to vector<2x1x256xf32>
    %13 = vector.shape_cast %12 : vector<2x1x256xf32> to vector<2x256xf32>
    %c0_5 = arith.constant 0 : index
    %c2 = arith.constant 2 : index
    %14 = memref.load %arg3[%c0_5, %c2] : memref<3x3xf32, #tpu.memory_space<smem>>
    %15 = vector.broadcast %14 : f32 to vector<2x256xf32>
    %16 = arith.mulf %13, %15 : vector<2x256xf32>
    %17 = arith.addf %11, %16 : vector<2x256xf32>
    %c0_6 = arith.constant 0 : index
    %18 = memref.load %arg4[%c0_6] : memref<3xf32, #tpu.memory_space<smem>>
    %19 = vector.broadcast %18 : f32 to vector<2x256xf32>
    %20 = arith.addf %17, %19 : vector<2x256xf32>
    %cst = arith.constant 0.000000e+00 : f32
    %21 = vector.broadcast %cst : f32 to vector<2x256xf32>
    %22 = arith.maximumf %20, %21 : vector<2x256xf32>
    %23 = vector.shape_cast %22 : vector<2x256xf32> to vector<2x1x256xf32>
    %24 = vector.extract_strided_slice %0 {offsets = [0, 0, 0], sizes = [2, 1, 256], strides = [1, 1, 1]} : vector<2x3x256xf32> to vector<2x1x256xf32>
    %25 = vector.shape_cast %24 : vector<2x1x256xf32> to vector<2x256xf32>
    %c1_7 = arith.constant 1 : index
    %c0_8 = arith.constant 0 : index
    %26 = memref.load %arg3[%c1_7, %c0_8] : memref<3x3xf32, #tpu.memory_space<smem>>
    %27 = vector.broadcast %26 : f32 to vector<2x256xf32>
    %28 = arith.mulf %25, %27 : vector<2x256xf32>
    %29 = vector.extract_strided_slice %0 {offsets = [0, 1, 0], sizes = [2, 1, 256], strides = [1, 1, 1]} : vector<2x3x256xf32> to vector<2x1x256xf32>
    %30 = vector.shape_cast %29 : vector<2x1x256xf32> to vector<2x256xf32>
    %c1_9 = arith.constant 1 : index
    %c1_10 = arith.constant 1 : index
    %31 = memref.load %arg3[%c1_9, %c1_10] : memref<3x3xf32, #tpu.memory_space<smem>>
    %32 = vector.broadcast %31 : f32 to vector<2x256xf32>
    %33 = arith.mulf %30, %32 : vector<2x256xf32>
    %34 = arith.addf %28, %33 : vector<2x256xf32>
    %35 = vector.extract_strided_slice %0 {offsets = [0, 2, 0], sizes = [2, 1, 256], strides = [1, 1, 1]} : vector<2x3x256xf32> to vector<2x1x256xf32>
    %36 = vector.shape_cast %35 : vector<2x1x256xf32> to vector<2x256xf32>
    %c1_11 = arith.constant 1 : index
    %c2_12 = arith.constant 2 : index
    %37 = memref.load %arg3[%c1_11, %c2_12] : memref<3x3xf32, #tpu.memory_space<smem>>
    %38 = vector.broadcast %37 : f32 to vector<2x256xf32>
    %39 = arith.mulf %36, %38 : vector<2x256xf32>
    %40 = arith.addf %34, %39 : vector<2x256xf32>
    %c1_13 = arith.constant 1 : index
    %41 = memref.load %arg4[%c1_13] : memref<3xf32, #tpu.memory_space<smem>>
    %42 = vector.broadcast %41 : f32 to vector<2x256xf32>
    %43 = arith.addf %40, %42 : vector<2x256xf32>
    %cst_14 = arith.constant 0.000000e+00 : f32
    %44 = vector.broadcast %cst_14 : f32 to vector<2x256xf32>
    %45 = arith.maximumf %43, %44 : vector<2x256xf32>
    %46 = vector.shape_cast %45 : vector<2x256xf32> to vector<2x1x256xf32>
    %47 = vector.extract_strided_slice %0 {offsets = [0, 0, 0], sizes = [2, 1, 256], strides = [1, 1, 1]} : vector<2x3x256xf32> to vector<2x1x256xf32>
    %48 = vector.shape_cast %47 : vector<2x1x256xf32> to vector<2x256xf32>
    %c2_15 = arith.constant 2 : index
    %c0_16 = arith.constant 0 : index
    %49 = memref.load %arg3[%c2_15, %c0_16] : memref<3x3xf32, #tpu.memory_space<smem>>
    %50 = vector.broadcast %49 : f32 to vector<2x256xf32>
    %51 = arith.mulf %48, %50 : vector<2x256xf32>
    %52 = vector.extract_strided_slice %0 {offsets = [0, 1, 0], sizes = [2, 1, 256], strides = [1, 1, 1]} : vector<2x3x256xf32> to vector<2x1x256xf32>
    %53 = vector.shape_cast %52 : vector<2x1x256xf32> to vector<2x256xf32>
    %c2_17 = arith.constant 2 : index
    %c1_18 = arith.constant 1 : index
    %54 = memref.load %arg3[%c2_17, %c1_18] : memref<3x3xf32, #tpu.memory_space<smem>>
    %55 = vector.broadcast %54 : f32 to vector<2x256xf32>
    %56 = arith.mulf %53, %55 : vector<2x256xf32>
    %57 = arith.addf %51, %56 : vector<2x256xf32>
    %58 = vector.extract_strided_slice %0 {offsets = [0, 2, 0], sizes = [2, 1, 256], strides = [1, 1, 1]} : vector<2x3x256xf32> to vector<2x1x256xf32>
    %59 = vector.shape_cast %58 : vector<2x1x256xf32> to vector<2x256xf32>
    %c2_19 = arith.constant 2 : index
    %c2_20 = arith.constant 2 : index
    %60 = memref.load %arg3[%c2_19, %c2_20] : memref<3x3xf32, #tpu.memory_space<smem>>
    %61 = vector.broadcast %60 : f32 to vector<2x256xf32>
    %62 = arith.mulf %59, %61 : vector<2x256xf32>
    %63 = arith.addf %57, %62 : vector<2x256xf32>
    %c2_21 = arith.constant 2 : index
    %64 = memref.load %arg4[%c2_21] : memref<3xf32, #tpu.memory_space<smem>>
    %65 = vector.broadcast %64 : f32 to vector<2x256xf32>
    %66 = arith.addf %63, %65 : vector<2x256xf32>
    %cst_22 = arith.constant 0.000000e+00 : f32
    %67 = vector.broadcast %cst_22 : f32 to vector<2x256xf32>
    %68 = arith.maximumf %66, %67 : vector<2x256xf32>
    %69 = vector.shape_cast %68 : vector<2x256xf32> to vector<2x1x256xf32>
    %70 = tpu.concatenate %23, %46, %69 in 1 : vector<2x1x256xf32>, vector<2x1x256xf32>, vector<2x1x256xf32> -> vector<2x3x256xf32>
    %c0_23 = arith.constant 0 : index
    %c0_24 = arith.constant 0 : index
    %c0_25 = arith.constant 0 : index
    %71 = vector.load %arg5[%c0_23, %c0_24, %c0_25] : memref<2x3x256xf32, #tpu.memory_space<vmem>>, vector<2x3x256xf32>
    tpu.vector_store %arg5[%c0_23, %c0_24, %c0_25], %70 {strides = array<i32>} : memref<2x3x256xf32, #tpu.memory_space<vmem>>, vector<2x3x256xf32>,
    return
  }
  func.func @transform_0(%arg0: i32, %arg1: i32) -> (i32, i32, i32) {
    %c0_i32 = arith.constant 0 : i32
    %c0_i32_0 = arith.constant 0 : i32
    return %arg0, %c0_i32, %arg1 : i32, i32, i32
  }
  func.func @transform_1(%arg0: i32, %arg1: i32) -> (i32, i32) {
    %c0_i32 = arith.constant 0 : i32
    %c0_i32_0 = arith.constant 0 : i32
    %c0_i32_1 = arith.constant 0 : i32
    return %c0_i32, %c0_i32_0 : i32, i32
  }
  func.func @transform_2(%arg0: i32, %arg1: i32) -> i32 {
    %c0_i32 = arith.constant 0 : i32
    %c0_i32_0 = arith.constant 0 : i32
    return %c0_i32 : i32
  }
  func.func @transform_3(%arg0: i32, %arg1: i32) -> (i32, i32, i32) {
    %c0_i32 = arith.constant 0 : i32
    %c0_i32_0 = arith.constant 0 : i32
    return %arg0, %c0_i32, %arg1 : i32, i32, i32
  }
}

</mosaic_0001>

<llo_original>
// kernel: _conv1x1_relu_impl.1
$region0: #{_conv1x1_relu_impl.1}
  #allocation0 [shape = 'u32[]', space=smem, size = 0x4, offset = 0x4, fixed_abs, tag = 'smem constant byte address 0x4 - core index']
  #allocation1 [shape = 'u32[144,128]{1,0:T(1,128)}', space=vmem, size = 0x12000, scoped, tag = 'internal scratch']
  %s0 = inlined_call_operand.vmem [shape: f32[2,3,256], index: 0, kind: input, shape index: {}]
  %s1 = inlined_call_operand.vmem [shape: f32[3,3], index: 1, kind: input, shape index: {}]
  %s2 = inlined_call_operand.vmem [shape: f32[3], index: 2, kind: input, shape index: {}]
  %s3 = inlined_call_operand.vmem [shape: f32[2,3,256], index: 3, kind: output, shape index: {}]
  %s4 = sld [smem:[#allocation0]]
  $region30: #{_conv1x1_relu_impl.1} parent=0
    _
  %s6 = ssub.s32 1, %s4
  %s7 = scalar_select 0, %s6, %s4
  $region1: #{_conv1x1_relu_impl.1} parent=0
    #allocation2 [shape = 'u8[2048]{0}', space=smem, size = 0x800, scoped, tag = 'input window, operand 1, single buffered']
    #allocation3 [shape = 's32[1]{0}', space=sflag, size = 0x4, scoped, tag = 'scoped memory for _conv1x1_relu_impl.1']
    #allocation4 [shape = 'u8[512]{0}', space=smem, size = 0x200, scoped, tag = 'input window, operand 2, single buffered']
    #allocation5 [shape = 's32[1]{0}', space=sflag, size = 0x4, scoped, tag = 'scoped memory for _conv1x1_relu_impl.1']
    %8 = vsyncpa [#allocation3], 0
    %9 = vsyncpa [#allocation5], 0
    // Predicated region
    $region2: #{_conv1x1_relu_impl.1} parent=1 // pred_check
      _
    $region3: #{_conv1x1_relu_impl.1} parent=1 // pred_check_branch
      %11 = sbr.rel (0) target = $region5
    $region4: #{_conv1x1_relu_impl.1} parent=1 // pred_region
      _
    $region5: #{_conv1x1_relu_impl.1} parent=1 // pred_fallthru
      _
    // Predicated region
    $region6: #{_conv1x1_relu_impl.1} parent=1 // pred_check
      _
    $region7: #{_conv1x1_relu_impl.1} parent=1 // pred_check_branch
      %13 = sbr.rel (0) target = $region9
    $region8: #{_conv1x1_relu_impl.1} parent=1 // pred_region
      %s15 = ssub.s32 64, 64
      %16 = vsyncadd [#allocation3], %s15
      %s18 = sshll.u32 %s1, 4
      %s19 = int_to_ptr.vmem [resolvable:$true] %s18
      %21 = dma.vmem_to_smem %s19, 64, [#allocation2], [#allocation3]
    $region9: #{_conv1x1_relu_impl.1} parent=1 // pred_fallthru
      _
    // Predicated region
    $region10: #{_conv1x1_relu_impl.1} parent=1 // pred_check
      _
    $region11: #{_conv1x1_relu_impl.1} parent=1 // pred_check_branch
      %23 = sbr.rel (0) target = $region13
    $region12: #{_conv1x1_relu_impl.1} parent=1 // pred_region
      %s25 = ssub.s32 16, 16
      %26 = vsyncadd [#allocation5], %s25
      %s28 = sshll.u32 %s2, 4
      %s29 = int_to_ptr.vmem [resolvable:$true] %s28
      %31 = dma.vmem_to_smem %s29, 16, [#allocation4], [#allocation5]
    $region13: #{_conv1x1_relu_impl.1} parent=1 // pred_fallthru
      _
    // Predicated region
    $region14: #{_conv1x1_relu_impl.1} parent=1 // pred_check
      _
    $region15: #{_conv1x1_relu_impl.1} parent=1 // pred_check_branch
      %33 = sbr.rel (0) target = $region17
    $region16: #{_conv1x1_relu_impl.1} parent=1 // pred_region
      %34 = dma.done [#allocation3], 64
    $region17: #{_conv1x1_relu_impl.1} parent=1 // pred_fallthru
      _
    // Predicated region
    $region18: #{_conv1x1_relu_impl.1} parent=1 // pred_check
      _
    $region19: #{_conv1x1_relu_impl.1} parent=1 // pred_check_branch
      %36 = sbr.rel (0) target = $region21
    $region20: #{_conv1x1_relu_impl.1} parent=1 // pred_region
      %37 = dma.done [#allocation5], 16
    $region21: #{_conv1x1_relu_impl.1} parent=1 // pred_fallthru
      _
    %38 = sfence
    %v39 = vld [vmem:[%s0] sm:$0x77]
    %v40 = vld [vmem:[%s0 + $0x8] sm:$0x77]
    %s41 = sld [smem:[#allocation2]]
    %v42 = vstv %s41
    %v43 = vmul.f32 %v39, %v42
    %v44 = vmul.f32 %v40, %v42
    %s45 = sld [smem:[#allocation2 + $0x1]]
    %v46 = vstv %s45
    %v47 = vmul.f32 %v39, %v46
    %v48 = vmul.f32 %v40, %v46
    %v51 = vrot.slane %v47, 5
    %v52 = vrot.slane %v51, 4
    %v53 = vrot.slane %v48, 5
    %v54 = vrot.slane %v53, 4
    %v57 = vadd.f32 %v43, %v52
    %v58 = vadd.f32 %v44, %v54
    %s59 = sld [smem:[#allocation2 + $0x2]]
    %v60 = vstv %s59
    %v61 = vmul.f32 %v39, %v60
    %v62 = vmul.f32 %v40, %v60
    %v65 = vrot.slane %v61, 6
    %v66 = vrot.slane %v65, 4
    %v67 = vrot.slane %v62, 6
    %v68 = vrot.slane %v67, 4
    %v71 = vadd.f32 %v57, %v66
    %v72 = vadd.f32 %v58, %v68
    %s73 = sld [smem:[#allocation4]]
    %v74 = vstv %s73
    %v75 = vadd.f32 %v71, %v74
    %v76 = vadd.f32 %v72, %v74
    %v77 = vmax.f32 %v75, 0.0
    %v78 = vmax.f32 %v76, 0.0
    %s79 = sld [smem:[#allocation2 + $0x80]]
    %v80 = vstv %s79
    %v81 = vmul.f32 %v39, %v80
    %v82 = vmul.f32 %v40, %v80
    %s83 = sld [smem:[#allocation2 + $0x81]]
    %v84 = vstv %s83
    %v85 = vmul.f32 %v39, %v84
    %v86 = vmul.f32 %v40, %v84
    %v89 = vrot.slane %v85, 5
    %v90 = vrot.slane %v89, 4
    %v91 = vrot.slane %v86, 5
    %v92 = vrot.slane %v91, 4
    %v95 = vadd.f32 %v81, %v90
    %v96 = vadd.f32 %v82, %v92
    %s97 = sld [smem:[#allocation2 + $0x82]]
    %v98 = vstv %s97
    %v99 = vmul.f32 %v39, %v98
    %v100 = vmul.f32 %v40, %v98
    %v103 = vrot.slane %v99, 6
    %v104 = vrot.slane %v103, 4
    %v105 = vrot.slane %v100, 6
    %v106 = vrot.slane %v105, 4
    %v109 = vadd.f32 %v95, %v104
    %v110 = vadd.f32 %v96, %v106
    %s111 = sld [smem:[#allocation4 + $0x1]]
    %v112 = vstv %s111
    %v113 = vadd.f32 %v109, %v112
    %v114 = vadd.f32 %v110, %v112
    %v115 = vmax.f32 %v113, 0.0
    %v116 = vmax.f32 %v114, 0.0
    %s117 = sld [smem:[#allocation2 + $0x100]]
    %v118 = vstv %s117
    %v119 = vmul.f32 %v39, %v118
    %v120 = vmul.f32 %v40, %v118
    %s121 = sld [smem:[#allocation2 + $0x101]]
    %v122 = vstv %s121
    %v123 = vmul.f32 %v39, %v122
    %v124 = vmul.f32 %v40, %v122
    %v127 = vrot.slane %v123, 5
    %v128 = vrot.slane %v127, 4
    %v129 = vrot.slane %v124, 5
    %v130 = vrot.slane %v129, 4
    %v133 = vadd.f32 %v119, %v128
    %v134 = vadd.f32 %v120, %v130
    %s135 = sld [smem:[#allocation2 + $0x102]]
    %v136 = vstv %s135
    %v137 = vmul.f32 %v39, %v136
    %v138 = vmul.f32 %v40, %v136
    %v141 = vrot.slane %v137, 6
    %v142 = vrot.slane %v141, 4
    %v143 = vrot.slane %v138, 6
    %v144 = vrot.slane %v143, 4
    %v147 = vadd.f32 %v133, %v142
    %v148 = vadd.f32 %v134, %v144
    %s149 = sld [smem:[#allocation4 + $0x2]]
    %v150 = vstv %s149
    %v151 = vadd.f32 %v147, %v150
    %v152 = vadd.f32 %v148, %v150
    %v153 = vmax.f32 %v151, 0.0
    %v154 = vmax.f32 %v152, 0.0
    %v157 = vlaneseq
    %v158 = vshrl.u32 %v157, 7
    %v159 = vsub.s32 0, %v158
    %v160 = vrot.slane %v77, %v159
    %v161 = vlaneseq
    %v162 = vshrl.u32 %v161, 7
    %v163 = vsub.s32 4, %v162
    %v164 = vrot.slane %v77, %v163
    %v165 = vlaneseq
    %v166 = vshrl.u32 %v165, 7
    %v167 = vsub.s32 0, %v166
    %v168 = vrot.slane %v78, %v167
    %v169 = vlaneseq
    %v170 = vshrl.u32 %v169, 7
    %v171 = vsub.s32 4, %v170
    %v172 = vrot.slane %v78, %v171
    %v179 = vlaneseq
    %v180 = vshrl.u32 %v179, 7
    %v181 = vsub.s32 0, %v180
    %v182 = vrot.slane %v115, %v181
    %v183 = vlaneseq
    %v184 = vshrl.u32 %v183, 7
    %v185 = vsub.s32 4, %v184
    %v186 = vrot.slane %v115, %v185
    %v187 = vlaneseq
    %v188 = vshrl.u32 %v187, 7
    %v189 = vsub.s32 0, %v188
    %v190 = vrot.slane %v116, %v189
    %v191 = vlaneseq
    %v192 = vshrl.u32 %v191, 7
    %v193 = vsub.s32 4, %v192
    %v194 = vrot.slane %v116, %v193
    %v201 = vlaneseq
    %v202 = vshrl.u32 %v201, 7
    %v203 = vsub.s32 0, %v202
    %v204 = vrot.slane %v153, %v203
    %v205 = vlaneseq
    %v206 = vshrl.u32 %v205, 7
    %v207 = vsub.s32 4, %v206
    %v208 = vrot.slane %v153, %v207
    %v209 = vlaneseq
    %v210 = vshrl.u32 %v209, 7
    %v211 = vsub.s32 0, %v210
    %v212 = vrot.slane %v154, %v211
    %v213 = vlaneseq
    %v214 = vshrl.u32 %v213, 7
    %v215 = vsub.s32 4, %v214
    %v216 = vrot.slane %v154, %v215
    %vm221 = vcmask 1040384
    %v222 = vsel %vm221, %v160, %v182
    %v223 = vsel %vm221, %v164, %v186
    %v224 = vsel %vm221, %v168, %v190
    %v225 = vsel %vm221, %v172, %v194
    %vm226 = vcmask 1041408
    %v227 = vsel %vm226, %v222, %v204
    %v228 = vsel %vm226, %v223, %v208
    %v229 = vsel %vm226, %v224, %v212
    %v230 = vsel %vm226, %v225, %v216
    %v235 = vcombine.low %v227, %v228
    %v236 = vcombine.low %v229, %v230
    %239 = vst [vmem:[%s3] sm:$0x77] %v235
    %240 = vst [vmem:[%s3 + $0x8] sm:$0x77] %v236
    // Predicated region
    $region22: #{_conv1x1_relu_impl.1} parent=1 // pred_check
      _
    $region23: #{_conv1x1_relu_impl.1} parent=1 // pred_check_branch
      %242 = sbr.rel (0) target = $region25
    $region24: #{_conv1x1_relu_impl.1} parent=1 // pred_region
      _
    $region25: #{_conv1x1_relu_impl.1} parent=1 // pred_fallthru
      _
    // Predicated region
    $region26: #{_conv1x1_relu_impl.1} parent=1 // pred_check
      _
    $region27: #{_conv1x1_relu_impl.1} parent=1 // pred_check_branch
      %244 = sbr.rel (0) target = $region29
    $region28: #{_conv1x1_relu_impl.1} parent=1 // pred_region
      _
    $region29: #{_conv1x1_relu_impl.1} parent=1 // pred_fallthru
      _
    %245 = vsyncpa [#allocation3], 1
    %246 = vsyncpa [#allocation5], 1

</llo_original>
